<compile_context>
chip_gen: v7x
topology: tpu7x:2x2x1
jax: 0.10.0
libtpu: 0.0.40
codegen_flags: <defaults>
</compile_context>

<pallas_src>
import functools

import jax
import jax.numpy as jnp
from jax.experimental import pallas as pl
from jax.experimental.pallas import tpu as pltpu


def _final_layer_kernel(x_ref, mod_ref, w_ref, b_ref, out_ref):
    """One (tT, H) token tile of one batch element.

    x_ref:   (tT, H)      input tokens (leading batch dim squeezed)
    mod_ref: (2, H) f32   row 0 = shift, row 1 = 1 + scale (this batch element)
    w_ref:   (H, out_p)   final linear weight (lane-padded)
    b_ref:   (1, out_p)   final linear bias, f32 (lane-padded)
    out_ref: (tT, out_p)  output tile
    """
    # ---- LayerNorm over last dim, no affine, eps=1e-6 (stats in f32) ----
    x = x_ref[...].astype(jnp.float32)                      # (tT, H)
    mean = jnp.mean(x, axis=-1, keepdims=True)
    xc = x - mean
    var = jnp.mean(xc * xc, axis=-1, keepdims=True)         # biased var (PyTorch LN)
    xn = xc * jax.lax.rsqrt(var + 1e-6)

    # ---- modulate: x * (1 + scale) + shift  (broadcast (1,H) over (tT,H)) ----
    shift = mod_ref[0:1, :]
    scale1 = mod_ref[1:2, :]
    mod = xn * scale1 + shift

    # ---- final linear on the MXU: (tT,H) @ (H,out_p), f32 accumulate, f32 bias ----
    out = jnp.dot(mod.astype(w_ref.dtype), w_ref[...],
                  preferred_element_type=jnp.float32)
    out_ref[...] = (out + b_ref[...]).astype(out_ref.dtype)


def _round_up(x, m):
    return -(-x // m) * m


def _vmem_capacity_bytes():
    """Physical VMEM per TensorCore; falls back to v7x's 64 MiB (worst case)."""
    try:
        cap = getattr(pltpu.get_tpu_info(), "vmem_capacity_bytes", None)
        if cap:
            return int(cap)
    except Exception:
        pass
    return 64 * 1024 * 1024


@functools.partial(jax.jit, static_argnames=("tile_t", "return_padded"))
def final_layer_forward(x, c, w_ada, b_ada, w_lin, b_lin, *,
                        tile_t=1024, return_padded=False):
    """x: (B,T,H), c: (B,H); weights stored (in_features, out_features)."""
    B, T, H = x.shape
    out_dim = w_lin.shape[1]

    # ---------- adaLN branch hoisted to XLA (tiny matmul, keeps w_ada out of VMEM) ----------
    silu_c = c * jax.nn.sigmoid(c)
    ada = (silu_c @ w_ada + b_ada).astype(jnp.float32)      # (B, 2H)
    shift = ada[:, :H]                                      # (B, H) f32
    scale1 = 1.0 + ada[:, H:2 * H]                          # (B, H) f32, pre-add the 1
    mod_params = jnp.stack([shift, scale1], axis=1)         # (B, 2, H) f32

    # ---------- lane-dense output: pad out_dim to a multiple of 128 ----------
    out_p = _round_up(max(out_dim, 1), 128)
    if out_p != out_dim:
        w_lin_p = jnp.pad(w_lin, ((0, 0), (0, out_p - out_dim)))
        b_lin_p = jnp.pad(b_lin, (0, out_p - out_dim))
    else:
        w_lin_p, b_lin_p = w_lin, b_lin
    # bf16 activations -> bf16 weights (guaranteed fast MXU path, half the VMEM).
    compute_dtype = jnp.bfloat16 if x.dtype == jnp.bfloat16 else w_lin.dtype
    w_lin_p = w_lin_p.astype(compute_dtype)
    b_lin_p = b_lin_p.reshape(1, out_p).astype(jnp.float32)

    # ---------- token-dim tiling (no padding of x; Pallas masks the ragged edge) ----------
    if T <= tile_t:
        tT = T                                              # full dim -> no (8,128) issue
    else:
        tT = max(8, (tile_t // 8) * 8)
    # Megacore guard (v7x: 2 TCs): keep >= 2 grid steps when B == 1.
    if B == 1 and pl.cdiv(T, tT) < 2 and T > 8:
        tT = min(tT, _round_up(pl.cdiv(T, 2), 8))

    # ---------- VMEM budget (per-generation cap, f32 temps accounted) ----------
    x_bytes = jnp.dtype(x.dtype).itemsize
    w_bytes = jnp.dtype(compute_dtype).itemsize

    def vmem_need(t):
        return (2 * t * H * x_bytes            # x tile, double-buffered
                + 3 * t * H * 4                # f32 LN intermediates (x, xn, mod)
                + t * out_p * 4                # f32 matmul result before cast
                + 2 * t * out_p * x_bytes      # out tile, double-buffered
                + H * out_p * w_bytes          # resident final-linear weight
                + out_p * 4 + 2 * H * 4)       # bias + shift/scale

    budget = int(0.75 * _vmem_capacity_bytes())
    while vmem_need(tT) > budget and tT > 64:
        tT = max(64, ((tT // 2) // 8) * 8)
    vmem_limit = int(min(budget, max(int(1.5 * vmem_need(tT)), 32 * 1024 * 1024)))

    grid = (B, pl.cdiv(T, tT))

    out_padded = pl.pallas_call(
        _final_layer_kernel,
        out_shape=jax.ShapeDtypeStruct((B, T, out_p), x.dtype),
        grid_spec=pltpu.PrefetchScalarGridSpec(
            num_scalar_prefetch=0,
            grid=grid,
            in_specs=[
                # x: squeeze leading batch dim -> kernel sees (tT, H)
                pl.BlockSpec((None, tT, H), lambda b, t: (b, t, 0)),
                # shift / (1+scale): per-batch (2,H) f32, grid-invariant along t
                pl.BlockSpec((None, 2, H), lambda b, t: (b, 0, 0)),
                # final linear weight / bias: fully resident, grid-invariant
                pl.BlockSpec((H, out_p), lambda b, t: (0, 0)),
                pl.BlockSpec((1, out_p), lambda b, t: (0, 0)),
            ],
            out_specs=pl.BlockSpec((None, tT, out_p), lambda b, t: (b, t, 0)),
        ),
        compiler_params=pltpu.CompilerParams(
            dimension_semantics=("parallel", "parallel"),
            vmem_limit_bytes=vmem_limit,
        ),
    )(x, mod_params, w_lin_p, b_lin_p)

    if return_padded:
        # Let the consumer (unpatchify) read the lane-padded slab directly and
        # skip an entire HBM slice pass.
        return out_padded
    return out_padded[..., :out_dim]


def final_layer_reference(x, c, w_ada, b_ada, w_lin, b_lin):
    """Pure-JAX reference matching the PyTorch module semantics."""
    silu_c = c * jax.nn.sigmoid(c)
    ada = silu_c @ w_ada + b_ada                            # (B, 2H)
    H = x.shape[-1]
    shift, scale = ada[:, :H], ada[:, H:]
    mean = jnp.mean(x, axis=-1, keepdims=True)
    var = jnp.mean((x - mean) ** 2, axis=-1, keepdims=True)
    xn = (x - mean) / jnp.sqrt(var + 1e-6)
    mod = xn * (1.0 + scale[:, None, :]) + shift[:, None, :]
    return mod @ w_lin + b_lin


if __name__ == "__main__":
    # Small shapes consistent with the module.
    hidden_size = 32
    patch_size = 2
    out_channels = 4
    out_dim = patch_size * patch_size * out_channels        # 16
    B, T = 2, 8

    key = jax.random.PRNGKey(0)
    k_x, k_c, k_wa, k_ba, k_wl, k_bl, k_x2 = jax.random.split(key, 7)

    x = jax.random.normal(k_x, (B, T, hidden_size), dtype=jnp.float32)
    c = jax.random.normal(k_c, (B, hidden_size), dtype=jnp.float32)

    # Weights stored (in_features, out_features) — transposed vs nn.Linear.
    w_ada = jax.random.normal(k_wa, (hidden_size, 2 * hidden_size), jnp.float32) * 0.02
    b_ada = jax.random.normal(k_ba, (2 * hidden_size,), jnp.float32) * 0.02
    w_lin = jax.random.normal(k_wl, (hidden_size, out_dim), jnp.float32) * 0.02
    b_lin = jax.random.normal(k_bl, (out_dim,), jnp.float32) * 0.02

    # Case 1: tiny shapes, single full-T tile.
    out = final_layer_forward(x, c, w_ada, b_ada, w_lin, b_lin)
    out = jax.block_until_ready(out)
    ref = final_layer_reference(x, c, w_ada, b_ada, w_lin, b_lin)
    assert out.shape == (B, T, out_dim), out.shape
    assert jnp.allclose(out, ref, atol=1e-5, rtol=1e-5), "mismatch vs reference"

    # Case 2: ragged token dim (T % tile_t != 0) exercises the masked edge tile.
    T2 = 12
    x2 = jax.random.normal(k_x2, (B, T2, hidden_size), dtype=jnp.float32)
    out2 = final_layer_forward(x2, c, w_ada, b_ada, w_lin, b_lin, tile_t=8)
    out2 = jax.block_until_ready(out2)
    ref2 = final_layer_reference(x2, c, w_ada, b_ada, w_lin, b_lin)
    assert out2.shape == (B, T2, out_dim), out2.shape
    assert jnp.allclose(out2, ref2, atol=1e-5, rtol=1e-5), "ragged-T mismatch vs reference"

    print("KERNEL_OK")
</pallas_src>

<mosaic_0001>
module attributes {stable_mosaic.version = 11 : i64} {
  func.func @_final_layer_kernel(%arg0: i32, %arg1: i32, %arg2: memref<1x8x32xf32, #tpu.memory_space<vmem>>, %arg3: memref<1x2x32xf32, #tpu.memory_space<vmem>>, %arg4: memref<32x128xf32, #tpu.memory_space<vmem>>, %arg5: memref<1x128xf32, #tpu.memory_space<vmem>>, %arg6: memref<1x8x128xf32, #tpu.memory_space<vmem>>) attributes {dimension_semantics = [#tpu.dimension_semantics<parallel>, #tpu.dimension_semantics<parallel>], iteration_bounds = array<i64: 2, 1>, scalar_prefetch = 0 : i64, scratch_operands = 0 : i64, tpu.core_type = #tpu.core_type<tc>, window_params = [{transform_indices = @transform_0, window_bounds = array<i64: 1, 8, 32>}, {transform_indices = @transform_1, window_bounds = array<i64: 1, 2, 32>}, {pipeline_mode = #tpu.pipeline_mode<synchronous>, transform_indices = @transform_2, window_bounds = array<i64: 32, 128>}, {pipeline_mode = #tpu.pipeline_mode<synchronous>, transform_indices = @transform_3, window_bounds = array<i64: 1, 128>}, {transform_indices = @transform_4, window_bounds = array<i64: 1, 8, 128>}]} {
    %c0 = arith.constant 0 : index
    %c0_0 = arith.constant 0 : index
    %c0_1 = arith.constant 0 : index
    %0 = vector.load %arg2[%c0, %c0_0, %c0_1] : memref<1x8x32xf32, #tpu.memory_space<vmem>>, vector<1x8x32xf32>
    %1 = vector.shape_cast %0 : vector<1x8x32xf32> to vector<8x32xf32>
    %cst = arith.constant dense<0.000000e+00> : vector<8xf32>
    %2 = vector.multi_reduction <add>, %1, %cst [1] : vector<8x32xf32> to vector<8xf32>
    %3 = vector.shape_cast %2 : vector<8xf32> to vector<8x1xf32>
    %cst_2 = arith.constant 3.200000e+01 : f32
    %4 = vector.broadcast %cst_2 : f32 to vector<8x1xf32>
    %5 = arith.divf %3, %4 : vector<8x1xf32>
    %6 = vector.broadcast %5 : vector<8x1xf32> to vector<8x32xf32>
    %7 = arith.subf %1, %6 : vector<8x32xf32>
    %8 = arith.mulf %7, %7 : vector<8x32xf32>
    %cst_3 = arith.constant dense<0.000000e+00> : vector<8xf32>
    %9 = vector.multi_reduction <add>, %8, %cst_3 [1] : vector<8x32xf32> to vector<8xf32>
    %10 = vector.shape_cast %9 : vector<8xf32> to vector<8x1xf32>
    %cst_4 = arith.constant 3.200000e+01 : f32
    %11 = vector.broadcast %cst_4 : f32 to vector<8x1xf32>
    %12 = arith.divf %10, %11 : vector<8x1xf32>
    %cst_5 = arith.constant 9.99999997E-7 : f32
    %13 = vector.broadcast %cst_5 : f32 to vector<8x1xf32>
    %14 = arith.addf %12, %13 : vector<8x1xf32>
    %15 = math.rsqrt %14 : vector<8x1xf32>
    %16 = vector.broadcast %15 : vector<8x1xf32> to vector<8x32xf32>
    %17 = arith.mulf %7, %16 : vector<8x32xf32>
    %c0_6 = arith.constant 0 : index
    %c0_7 = arith.constant 0 : index
    %c0_8 = arith.constant 0 : index
    %18 = vector.load %arg3[%c0_6, %c0_7, %c0_8] : memref<1x2x32xf32, #tpu.memory_space<vmem>>, vector<1x1x32xf32>
    %19 = vector.shape_cast %18 : vector<1x1x32xf32> to vector<1x32xf32>
    %c0_9 = arith.constant 0 : index
    %c1 = arith.constant 1 : index
    %c0_10 = arith.constant 0 : index
    %20 = vector.load %arg3[%c0_9, %c1, %c0_10] : memref<1x2x32xf32, #tpu.memory_space<vmem>>, vector<1x1x32xf32>
    %21 = vector.shape_cast %20 : vector<1x1x32xf32> to vector<1x32xf32>
    %22 = vector.broadcast %21 : vector<1x32xf32> to vector<8x32xf32>
    %23 = arith.mulf %17, %22 : vector<8x32xf32>
    %24 = vector.broadcast %19 : vector<1x32xf32> to vector<8x32xf32>
    %25 = arith.addf %23, %24 : vector<8x32xf32>
    %c0_11 = arith.constant 0 : index
    %c0_12 = arith.constant 0 : index
    %26 = vector.load %arg4[%c0_11, %c0_12] : memref<32x128xf32, #tpu.memory_space<vmem>>, vector<32x128xf32>
    %cst_13 = arith.constant dense<0.000000e+00> : vector<8x128xf32>
    %27 = tpu.matmul %25, %26, %cst_13 {dimension_numbers = #tpu.dot_dimension_numbers<[1], [0], [0], [1], [0, 0, 1, 1], [], []>} : vector<8x32xf32>, vector<32x128xf32>, vector<8x128xf32> -> vector<8x128xf32>
    %c0_14 = arith.constant 0 : index
    %c0_15 = arith.constant 0 : index
    %28 = vector.load %arg5[%c0_14, %c0_15] : memref<1x128xf32, #tpu.memory_space<vmem>>, vector<1x128xf32>
    %29 = vector.broadcast %28 : vector<1x128xf32> to vector<8x128xf32>
    %30 = arith.addf %27, %29 : vector<8x128xf32>
    %c0_16 = arith.constant 0 : index
    %c0_17 = arith.constant 0 : index
    %c0_18 = arith.constant 0 : index
    %31 = vector.load %arg6[%c0_16, %c0_17, %c0_18] : memref<1x8x128xf32, #tpu.memory_space<vmem>>, vector<1x8x128xf32>
    %32 = vector.shape_cast %31 : vector<1x8x128xf32> to vector<8x128xf32>
    %33 = vector.shape_cast %30 : vector<8x128xf32> to vector<1x8x128xf32>
    tpu.vector_store %arg6[%c0_16, %c0_17, %c0_18], %33 {strides = array<i32>} : memref<1x8x128xf32, #tpu.memory_space<vmem>>, vector<1x8x128xf32>,
    return
  }
  func.func @transform_0(%arg0: i32, %arg1: i32) -> (i32, i32, i32) {
    %c0_i32 = arith.constant 0 : i32
    %c0_i32_0 = arith.constant 0 : i32
    return %arg0, %arg1, %c0_i32 : i32, i32, i32
  }
  func.func @transform_1(%arg0: i32, %arg1: i32) -> (i32, i32, i32) {
    %c0_i32 = arith.constant 0 : i32
    %c0_i32_0 = arith.constant 0 : i32
    %c0_i32_1 = arith.constant 0 : i32
    return %arg0, %c0_i32, %c0_i32_0 : i32, i32, i32
  }
  func.func @transform_2(%arg0: i32, %arg1: i32) -> (i32, i32) {
    %c0_i32 = arith.constant 0 : i32
    %c0_i32_0 = arith.constant 0 : i32
    %c0_i32_1 = arith.constant 0 : i32
    return %c0_i32, %c0_i32_0 : i32, i32
  }
  func.func @transform_3(%arg0: i32, %arg1: i32) -> (i32, i32) {
    %c0_i32 = arith.constant 0 : i32
    %c0_i32_0 = arith.constant 0 : i32
    %c0_i32_1 = arith.constant 0 : i32
    return %c0_i32, %c0_i32_0 : i32, i32
  }
  func.func @transform_4(%arg0: i32, %arg1: i32) -> (i32, i32, i32) {
    %c0_i32 = arith.constant 0 : i32
    %c0_i32_0 = arith.constant 0 : i32
    return %arg0, %arg1, %c0_i32 : i32, i32, i32
  }
}

</mosaic_0001>

<llo_original>
// kernel: final_layer_forward.1
$region0: #{final_layer_forward.1}
  #allocation0 [shape = 'u32[]', space=smem, size = 0x4, offset = 0x4, fixed_abs, tag = 'smem constant byte address 0x4 - core index']
  #allocation1 [shape = 'u32[144,128]{1,0:T(1,128)}', space=vmem, size = 0x12000, scoped, tag = 'internal scratch']
  %s0 = inlined_call_operand.vmem [shape: f32[2,8,32], index: 0, kind: input, shape index: {}]
  %s1 = inlined_call_operand.vmem [shape: f32[2,2,32], index: 1, kind: input, shape index: {}]
  %s2 = inlined_call_operand.vmem [shape: f32[32,128], index: 2, kind: input, shape index: {}]
  %s3 = inlined_call_operand.vmem [shape: f32[1,128], index: 3, kind: input, shape index: {}]
  %s4 = inlined_call_operand.hbm [shape: f32[2,8,128], index: 4, kind: output, shape index: {}]
  %s5 = sld [smem:[#allocation0]]
  $region49: #{final_layer_forward.1} parent=0
    _
  %s7 = ssub.s32 1, %s5
  %s8 = scalar_select 0, %s7, %s5
  $region1: #{final_layer_forward.1} parent=0
    #allocation2 [shape = 'u8[8192]{0}', space=vmem, size = 0x2000, scoped, tag = 'output window, operand 0']
    #allocation3 [shape = 's32[2]{0}', space=sflag, size = 0x8, scoped, tag = 'scoped memory for final_layer_forward.1']
    %9 = vsyncpa [#allocation3], 0
    %s10 = scalar_lea.sflag [#allocation3], 1
    %11 = vsyncpa %s10, 0
    loop: start=0, step=1, limit=4
    $region2: #{final_layer_forward.1} parent=1 // loop_pre_header
      _
    $region3: #{final_layer_forward.1} parent=1 // loop_header
      %s13 = sphi 0, %s17
      %p14 = scmp.ge.s32.totalorder %s13, 4
      %s20 = sphi 0, %s32
      %s21 = sphi 0, %s28
      %s22 = sphi 0, %s20
      %s23 = sphi 0, %s21
      %s24 = sphi 0, %s22
      %s25 = sphi 0, %s23
      %s37 = sphi 0, %s39
      %s40 = sphi 0, %s37
      %s41 = sphi 0, %s40
      %s57 = sphi 0, %s41
      %s63 = sphi 0, %s65
      %s66 = sphi 0, %s63
      %s67 = sphi 0, %s66
      %s83 = sphi 0, %s67
      %s87 = sphi 0, %s87
      %s89 = sphi 0, %s87
      %s90 = sphi 0, %s89
      %s104 = sphi 0, %s90
      %s108 = sphi 0, %s108
      %s110 = sphi 0, %s108
      %s111 = sphi 0, %s110
      %s125 = sphi 0, %s111
      %s133 = sphi 0, %s135
      %s136 = sphi 0, %s133
      %s137 = sphi 0, %s136
      %s153 = sphi 0, %s137
    $region4: #{final_layer_forward.1} parent=1 // loop_header_branch
      %16 = sbr.rel (%p14) target = $region8
    $region5: #{final_layer_forward.1} parent=1 // loop_body
      %s18 = ssub.s32 %s13, 1
      %s19 = ssub.s32 %s13, 2
      %s26 = sadd.s32 1, %s21
      %p27 = scmp.ge.s32.totalorder %s26, 1
      %s28 = scalar_select %p27, 0, %s26
      %s29 = sadd.s32 1, %s20
      %s30 = scalar_select %p27, %s29, %s20
      %p31 = scmp.ge.s32.totalorder %s30, 2
      %s32 = scalar_select %p31, 0, %s30
      %s33 = ssub.s32 %s20, %s32
      %s34 = ssub.s32 %s21, %s28
      %s35 = sor.u32 %s33, %s34
      %p36 = scmp.eq.s32.totalorder %s35, 0
      %s38 = sadd.s32 %s37, 1
      %s39 = scalar_select %p36, %s37, %s38
      %p42 = pneg %p36
      %p43 = scmp.eq.s32.totalorder %s13, 1
      %p44 = por %p42, %p43
      %p45 = scmp.ne.s32.totalorder %s37, %s40
      %p46 = scmp.eq.s32.totalorder %s13, 0
      %p47 = por %p45, %p46
      %p48 = scmp.ne.s32.totalorder %s37, %s40
      %p49 = scmp.eq.s32.totalorder %s18, 1
      %p50 = por %p48, %p49
      %p51 = scmp.ne.s32.totalorder %s40, %s41
      %p52 = scmp.eq.s32.totalorder %s18, 0
      %p53 = por %p51, %p52
      %p54 = scmp.ne.s32.totalorder %s40, %s41
      %p55 = scmp.eq.s32.totalorder %s19, 1
      %p56 = por %p54, %p55
      %p58 = scmp.ne.s32.totalorder %s41, %s57
      %p59 = scmp.eq.s32.totalorder %s19, 0
      %p60 = por %p58, %p59
      %s61 = ssub.s32 %s20, %s32
      %p62 = scmp.eq.s32.totalorder %s61, 0
      %s64 = sadd.s32 %s63, 1
      %s65 = scalar_select %p62, %s63, %s64
      %p68 = pneg %p62
      %p69 = scmp.eq.s32.totalorder %s13, 1
      %p70 = por %p68, %p69
      %p71 = scmp.ne.s32.totalorder %s63, %s66
      %p72 = scmp.eq.s32.totalorder %s13, 0
      %p73 = por %p71, %p72
      %p74 = scmp.ne.s32.totalorder %s63, %s66
      %p75 = scmp.eq.s32.totalorder %s18, 1
      %p76 = por %p74, %p75
      %p77 = scmp.ne.s32.totalorder %s66, %s67
      %p78 = scmp.eq.s32.totalorder %s18, 0
      %p79 = por %p77, %p78
      %p80 = scmp.ne.s32.totalorder %s66, %s67
      %p81 = scmp.eq.s32.totalorder %s19, 1
      %p82 = por %p80, %p81
      %p84 = scmp.ne.s32.totalorder %s67, %s83
      %p85 = scmp.eq.s32.totalorder %s19, 0
      %p86 = por %p84, %p85
      %s88 = sadd.s32 %s87, 1
      %p91 = scmp.eq.s32.totalorder %s13, 1
      %p92 = scmp.ne.s32.totalorder %s87, %s89
      %p93 = scmp.eq.s32.totalorder %s13, 0
      %p94 = por %p92, %p93
      %p95 = scmp.ne.s32.totalorder %s87, %s89
      %p96 = scmp.eq.s32.totalorder %s18, 1
      %p97 = por %p95, %p96
      %p98 = scmp.ne.s32.totalorder %s89, %s90
      %p99 = scmp.eq.s32.totalorder %s18, 0
      %p100 = por %p98, %p99
      %p101 = scmp.ne.s32.totalorder %s89, %s90
      %p102 = scmp.eq.s32.totalorder %s19, 1
      %p103 = por %p101, %p102
      %p105 = scmp.ne.s32.totalorder %s90, %s104
      %p106 = scmp.eq.s32.totalorder %s19, 0
      %p107 = por %p105, %p106
      %s109 = sadd.s32 %s108, 1
      %p112 = scmp.eq.s32.totalorder %s13, 1
      %p113 = scmp.ne.s32.totalorder %s108, %s110
      %p114 = scmp.eq.s32.totalorder %s13, 0
      %p115 = por %p113, %p114
      %p116 = scmp.ne.s32.totalorder %s108, %s110
      %p117 = scmp.eq.s32.totalorder %s18, 1
      %p118 = por %p116, %p117
      %p119 = scmp.ne.s32.totalorder %s110, %s111
      %p120 = scmp.eq.s32.totalorder %s18, 0
      %p121 = por %p119, %p120
      %p122 = scmp.ne.s32.totalorder %s110, %s111
      %p123 = scmp.eq.s32.totalorder %s19, 1
      %p124 = por %p122, %p123
      %p126 = scmp.ne.s32.totalorder %s111, %s125
      %p127 = scmp.eq.s32.totalorder %s19, 0
      %p128 = por %p126, %p127
      %s129 = ssub.s32 %s20, %s32
      %s130 = ssub.s32 %s21, %s28
      %s131 = sor.u32 %s129, %s130
      %p132 = scmp.eq.s32.totalorder %s131, 0
      %s134 = sadd.s32 %s133, 1
      %s135 = scalar_select %p132, %s133, %s134
      %p138 = pneg %p132
      %p139 = scmp.eq.s32.totalorder %s13, 1
      %p140 = por %p138, %p139
      %p141 = scmp.ne.s32.totalorder %s133, %s136
      %p142 = scmp.eq.s32.totalorder %s13, 0
      %p143 = por %p141, %p142
      %p144 = scmp.ne.s32.totalorder %s133, %s136
      %p145 = scmp.eq.s32.totalorder %s18, 1
      %p146 = por %p144, %p145
      %p147 = scmp.ne.s32.totalorder %s136, %s137
      %p148 = scmp.eq.s32.totalorder %s18, 0
      %p149 = por %p147, %p148
      %p150 = scmp.ne.s32.totalorder %s136, %s137
      %p151 = scmp.eq.s32.totalorder %s19, 1
      %p152 = por %p150, %p151
      %p154 = scmp.ne.s32.totalorder %s137, %s153
      %p155 = scmp.eq.s32.totalorder %s19, 0
      %p156 = por %p154, %p155
      %p157 = scmp.le.s32.totalorder 1, %s13
      %p158 = scmp.lt.s32.totalorder %s13, 3
      %p159 = pnand %p157, %p158
      %p160 = pneg %p159
      // Predicated region
      $region9: #{final_layer_forward.1} parent=5 // pred_check
        _
      $region10: #{final_layer_forward.1} parent=5 // pred_check_branch
        %162 = sbr.rel (%p159) target = $region12
      $region11: #{final_layer_forward.1} parent=5 // pred_region
        %s163 = ssub.s32 %s13, 1
        // Predicated region
        $region13: #{final_layer_forward.1} parent=11 // pred_check
          %p164 = pneg %p100
        $region14: #{final_layer_forward.1} parent=11 // pred_check_branch
          %166 = sbr.rel (%p164) target = $region16
        $region15: #{final_layer_forward.1} parent=11 // pred_region
          _
        $region16: #{final_layer_forward.1} parent=11 // pred_fallthru
          _
        // Predicated region
        $region17: #{final_layer_forward.1} parent=11 // pred_check
          %p167 = pneg %p121
        $region18: #{final_layer_forward.1} parent=11 // pred_check_branch
          %169 = sbr.rel (%p167) target = $region20
        $region19: #{final_layer_forward.1} parent=11 // pred_region
          _
        $region20: #{final_layer_forward.1} parent=11 // pred_fallthru
          _
      $region12: #{final_layer_forward.1} parent=5 // pred_fallthru
        _
      %p170 = scmp.lt.s32.totalorder %s13, 2
      // Predicated region
      $region21: #{final_layer_forward.1} parent=5 // pred_check
        %p171 = pneg %p170
      $region22: #{final_layer_forward.1} parent=5 // pred_check_branch
        %173 = sbr.rel (%p171) target = $region24
      $region23: #{final_layer_forward.1} parent=5 // pred_region
        // Predicated region
        $region25: #{final_layer_forward.1} parent=23 // pred_check
          %p174 = pneg %p47
        $region26: #{final_layer_forward.1} parent=23 // pred_check_branch
          %176 = sbr.rel (%p174) target = $region28
        $region27: #{final_layer_forward.1} parent=23 // pred_region
          %p177 = scmp.lt.s32.totalorder %s20, 1
          %s178 = scalar_select %p177, %s20, 1
          %p179 = scmp.lt.s32.totalorder %s21, 0
          %s180 = scalar_select %p179, %s21, 0
          %s181 = sadd.s32 %s180, %s178
          %s182 = smul.addr %s181, 8
          %s183 = scalar_lea.vmem %s0, %s182
        $region28: #{final_layer_forward.1} parent=23 // pred_fallthru
          _
        // Predicated region
        $region29: #{final_layer_forward.1} parent=23 // pred_check
          %p184 = pneg %p73
        $region30: #{final_layer_forward.1} parent=23 // pred_check_branch
          %186 = sbr.rel (%p184) target = $region32
        $region31: #{final_layer_forward.1} parent=23 // pred_region
          %p187 = scmp.lt.s32.totalorder %s20, 1
          %s188 = scalar_select %p187, %s20, 1
          %s189 = smul.addr %s188, 2
          %s190 = scalar_lea.vmem %s1, %s189
        $region32: #{final_layer_forward.1} parent=23 // pred_fallthru
          _
      $region24: #{final_layer_forward.1} parent=5 // pred_fallthru
        _
      %p191 = scmp.le.s32.totalorder 1, %s13
      %p192 = scmp.lt.s32.totalorder %s13, 3
      %p193 = pnand %p191, %p192
      %p194 = pneg %p193
      // Predicated region
      $region33: #{final_layer_forward.1} parent=5 // pred_check
        _
      $region34: #{final_layer_forward.1} parent=5 // pred_check_branch
        %196 = sbr.rel (%p193) target = $region36
      $region35: #{final_layer_forward.1} parent=5 // pred_region
        %s197 = ssub.s32 %s13, 1
        %p198 = scmp.lt.s32.totalorder %s22, 1
        %s199 = scalar_select %p198, %s22, 1
        %p200 = scmp.lt.s32.totalorder %s23, 0
        %s201 = scalar_select %p200, %s23, 0
        %s202 = sadd.s32 %s201, %s199
        %s203 = smul.addr %s202, 8
        %s204 = scalar_lea.vmem %s0, %s203
        %p205 = pneg %p53
        %p206 = pneg %p50
        %p207 = scmp.lt.s32.totalorder %s22, 1
        %s208 = scalar_select %p207, %s22, 1
        %s209 = smul.addr %s208, 2
        %s210 = scalar_lea.vmem %s1, %s209
        %p211 = pneg %p79
        %p212 = pneg %p76
        %p213 = pneg %p100
        %p214 = pneg %p97
        %p215 = pneg %p121
        %p216 = pneg %p118
        %p217 = pneg %p149
        %p218 = pneg %p146
        %s219 = sand.u32 %s136, 1
        %s220 = scalar_lea.sflag [#allocation3], %s219
        %s221 = sand.u32 %s136, 1
        %s222 = smul.addr %s221, 8
        %s223 = scalar_lea.vmem [#allocation2], %s222
        %p224 = scmp.lt.s32.totalorder %s22, 1
        %s225 = scalar_select %p224, %s22, 1
        %p226 = scmp.lt.s32.totalorder %s23, 0
        %s227 = scalar_select %p226, %s23, 0
        %s228 = sadd.s32 %s227, %s225
        %s229 = smul.addr %s228, 8
        %s230 = scalar_lea.vmem %s0, %s229
        %p231 = scmp.lt.s32.totalorder %s22, 1
        %s232 = scalar_select %p231, %s22, 1
        %s233 = smul.addr %s232, 2
        %s234 = scalar_lea.vmem %s1, %s233
        %v235 = vld [vmem:[%s230] sm:$0xff]
        %vm236 = vcmask 261120
        %v237 = vsel %vm236, %v235, 0.0
        %238 = vadd.xlane.f32.xlu0 %v237
        %v239 = vpop.xlane.xlu0 %238
        %v240 = vrcp.pop 32.0
        %v241 = vmul.f32 %v239, %v240
        %v242 = vsub.f32 %v235, %v241
        %v243 = vmul.f32 %v242, %v242
        %v244 = vsel %vm236, %v243, 0.0
        %245 = vadd.xlane.f32.xlu0 %v244
        %v246 = vpop.xlane.xlu0 %245
        %v247 = vmul.f32 %v246, %v240
        %v248 = vadd.f32 %v247, 1e-06
        %v249 = vrsqrt.pop %v248
        %v250 = vmul.f32 %v242, %v249
        %v251 = vld [vmem:[%s234] sm:$0x1]
        %v252 = vld [vmem:[%s234 + $0x1] sm:$0x1]
        %v253 = vlaneseq
        %v254 = vshrl.u32 %v253, 7
        %v255 = vsub.s32 0, %v254
        %v256 = vrot.slane %v252, %v255
        %v257 = vmul.f32 %v250, %v256
        %v258 = vlaneseq
        %v259 = vshrl.u32 %v258, 7
        %v260 = vsub.s32 0, %v259
        %v261 = vrot.slane %v251, %v260
        %v262 = vadd.f32 %v257, %v261
        %v263 = vld [vmem:[%s2] sm:$0xff]
        %v264 = vld [vmem:[%s2 + $0x8] sm:$0xff]
        %v265 = vld [vmem:[%s2 + $0x10] sm:$0xff]
        %v266 = vld [vmem:[%s2 + $0x18] sm:$0xff]
        %v267 = vld [vmem:[%s3] sm:$0x1]
        %v269 = vlaneseq
        %v270 = vshrl.u32 %v269, 7
        %v271 = vsub.s32 0, %v270
        %v272 = vrot.slane %v267, %v271
        %v275 = vsel %vm236, %v262, 0
        %277 = vmatprep.subr.mxu0 0.0
        %278 = vmatpush1.msra.mxu0 %v263
        %279 = vmatprep.subr.mxu0 0.0
        %280 = vmatpush1.msra.mxu0 %v264
        %281 = vmatprep.subr.mxu0 0.0
        %282 = vmatpush1.msra.mxu0 %v265
        %283 = vmatprep.subr.mxu0 0.0
        %284 = vmatpush1.msra.mxu0 %v266
        %285 = vmatprep.subr.mxu0 0.0
        %286 = vmatpush1.msra.mxu0 0.0
        %287 = vmatprep.subr.mxu0 0.0
        %288 = vmatpush1.msra.mxu0 0.0
        %289 = vmatprep.subr.mxu0 0.0
        %290 = vmatpush1.msra.mxu0 0.0
        %291 = vmatprep.subr.mxu0 0.0
        %292 = vmatpush1.msra.mxu0 0.0
        %293 = vmatprep.subr.mxu0 0.0
        %294 = vmatpush1.msra.mxu0 0.0
        %295 = vmatprep.subr.mxu0 0.0
        %296 = vmatpush1.msra.mxu0 0.0
        %297 = vmatprep.subr.mxu0 0.0
        %298 = vmatpush1.msra.mxu0 0.0
        %299 = vmatprep.subr.mxu0 0.0
        %300 = vmatpush1.msra.mxu0 0.0
        %301 = vmatprep.subr.mxu0 0.0
        %302 = vmatpush1.msra.mxu0 0.0
        %303 = vmatprep.subr.mxu0 0.0
        %304 = vmatpush1.msra.mxu0 0.0
        %305 = vmatprep.subr.mxu0 0.0
        %306 = vmatpush1.msra.mxu0 0.0
        %307 = vmatprep.subr.mxu0 0.0
        %308 = vmatpush1.msra.mxu0 0.0
        %309 = vmatprep.subr.mxu0 0.0
        %310 = vmatpush1.msra.mxu0 0.0
        %311 = vmatprep.subr.mxu0 0.0
        %312 = vmatpush1.msra.mxu0 0.0
        %313 = vmatprep.subr.mxu0 0.0
        %314 = vmatpush1.msra.mxu0 0.0
        %315 = vmatprep.subr.mxu0 0.0
        %316 = vmatpush1.msra.mxu0 0.0
        %317 = vmatprep.subr.mxu0 0.0
        %318 = vmatpush1.msra.mxu0 0.0
        %319 = vmatprep.subr.mxu0 0.0
        %320 = vmatpush1.msra.mxu0 0.0
        %321 = vmatprep.subr.mxu0 0.0
        %322 = vmatpush1.msra.mxu0 0.0
        %323 = vmatprep.subr.mxu0 0.0
        %324 = vmatpush1.msra.mxu0 0.0
        %325 = vmatprep.subr.mxu0 0.0
        %326 = vmatpush1.msra.mxu0 0.0
        %327 = vmatprep.subr.mxu0 0.0
        %328 = vmatpush1.msra.mxu0 0.0
        %329 = vmatprep.subr.mxu0 0.0
        %330 = vmatpush1.msra.mxu0 0.0
        %331 = vmatprep.subr.mxu0 0.0
        %332 = vmatpush1.msra.mxu0 0.0
        %333 = vmatprep.subr.mxu0 0.0
        %334 = vmatpush1.msra.mxu0 0.0
        %335 = vmatprep.subr.mxu0 0.0
        %336 = vmatpush1.msra.mxu0 0.0
        %337 = vmatprep.subr.mxu0 0.0
        %338 = vmatpush1.msra.mxu0 0.0
        %339 = vmatprep.subr.mxu0 0.0
        %340 = vmatpush1.msra.mxu0 0.0
        %341 = vmatprep.mubr.f32.mxu0 0.0
        %342 = vmatmul.mubr.f32.gmra.mrb[0].mxu0 %v275
        %v343 = vpop.f32.mrb[0].mxu0
        %v344 = vadd.f32 %v272, %v343
        %v345 = vpop.f32.mrb[0].mxu0
        %346 = vdwg.mxu0
        %347 = vst [vmem:[%s223] sm:$0xff] %v344
        %s348 = sand.u32 %s136, 1
        %s349 = scalar_lea.sflag [#allocation3], %s348
        %s350 = sand.u32 %s136, 1
        %s351 = smul.addr %s350, 8
        %s352 = scalar_lea.vmem [#allocation2], %s351
        // Predicated region
        $region37: #{final_layer_forward.1} parent=35 // pred_check
          %p353 = pneg %p146
        $region38: #{final_layer_forward.1} parent=35 // pred_check_branch
          %355 = sbr.rel (%p353) target = $region40
        $region39: #{final_layer_forward.1} parent=35 // pred_region
          %s357 = ssub.s32 128, 128
          %358 = vsyncadd %s349, %s357
          %s359 = sadd.s32 %s23, %s22
          %s360 = smul.addr %s359, 128
          %s361 = scalar_lea.hbm %s4, %s360
          %s363 = sshll.u32 %s352, 4
          %s364 = int_to_ptr.vmem [resolvable:$true] %s363
          %366 = dma.vmem_to_hbm [thread:$0]  %s364, 128, %s361, %s349
        $region40: #{final_layer_forward.1} parent=35 // pred_fallthru
          _
      $region36: #{final_layer_forward.1} parent=5 // pred_fallthru
        _
      %p367 = scmp.le.s32.totalorder 2, %s13
      // Predicated region
      $region41: #{final_layer_forward.1} parent=5 // pred_check
        %p368 = pneg %p367
      $region42: #{final_layer_forward.1} parent=5 // pred_check_branch
        %370 = sbr.rel (%p368) target = $region44
      $region43: #{final_layer_forward.1} parent=5 // pred_region
        %s371 = ssub.s32 %s13, 2
        // Predicated region
        $region45: #{final_layer_forward.1} parent=43 // pred_check
          %p372 = pneg %p152
        $region46: #{final_layer_forward.1} parent=43 // pred_check_branch
          %374 = sbr.rel (%p372) target = $region48
        $region47: #{final_layer_forward.1} parent=43 // pred_region
          %s375 = sand.u32 %s137, 1
          %s376 = scalar_lea.sflag [#allocation3], %s375
          %s377 = sand.u32 %s137, 1
          %s378 = smul.addr %s377, 8
          %s379 = scalar_lea.vmem [#allocation2], %s378
          %380 = dma.done %s376, 128
        $region48: #{final_layer_forward.1} parent=43 // pred_fallthru
          _
      $region44: #{final_layer_forward.1} parent=5 // pred_fallthru
        _
    $region6: #{final_layer_forward.1} parent=1 // loop_footer
      %s17 = sadd.s32 1, %s13
    $region7: #{final_layer_forward.1} parent=1 // loop_footer_branch
      %12 = sbr.rel target = $region3
    $region8: #{final_layer_forward.1} parent=1 // loop_exit
      _
    %381 = vsyncpa [#allocation3], 1
    %s382 = scalar_lea.sflag [#allocation3], 1
    %383 = vsyncpa %s382, 1

</llo_original>
